<compile_context>
chip_gen: v6e
topology: v6e:2x2x1
jax: 0.10.0
libtpu: 0.0.40
codegen_flags: <defaults>
</compile_context>

<pallas_src>
import math

import jax
import jax.numpy as jnp
from jax import lax
from jax.experimental import pallas as pl
from jax.experimental.pallas import tpu as pltpu


def _round_up(a: int, b: int) -> int:
    return (a + b - 1) // b * b


def _cdiv(a: int, b: int) -> int:
    return (a + b - 1) // b


def _conv1d_k2_kernel(w0_ref, w1_ref, x_ref, halo_ref, o_ref):
    """One (C, TL) lane tile of the 2-tap conv.

    w0_ref, w1_ref : (C, C)   tap-0 / tap-1 weights
    x_ref          : (C, TL)  lane tile along the (flattened) time axis
    halo_ref       : (C, 128) lane 0 holds the first column of the NEXT tile
    o_ref          : (C, TL)  lane-dense output tile
    """
    x0 = x_ref[...]
    _, tl = x0.shape

    # Taps at t+1: cyclic roll by TL-1 (== shift left by 1) on the XLU; the
    # wrapped last column is patched with the precomputed halo column, so every
    # grid step is fully independent ("parallel" -> megacore shardable).
    x1 = pltpu.roll(x0, shift=tl - 1, axis=1)
    lane = lax.broadcasted_iota(jnp.int32, (1, tl), 1)
    x1 = jnp.where(lane == tl - 1, halo_ref[:, 0:1], x1)

    # Two MXU passes accumulated in f32 (no sublane-concat copy).
    acc = jnp.dot(w0_ref[...], x0, preferred_element_type=jnp.float32)
    acc = acc + jnp.dot(w1_ref[...], x1, preferred_element_type=jnp.float32)
    o_ref[...] = acc.astype(o_ref.dtype)


def resudial_dilated_block(x, weight, *, compute_dtype=None,
                           target_block_bytes=1 << 20,
                           min_l_for_time_tiling=2048):
    """Conv1d(C, C, kernel_size=2, dilation=1, padding=0, bias=False).

    x      : (N, C, L)  input (PyTorch NCL layout)
    weight : (C, C, 2)  Conv1d weight (out_ch, in_ch, k)
    returns: (N, C, L-1)
    """
    n, c, l = x.shape
    c_out, c_in, k = weight.shape
    if k != 2 or c_in != c or c_out != c:
        raise ValueError("expected square (C, C, 2) Conv1d weight")
    if l < 2:
        raise ValueError("need L >= 2 for kernel_size=2, padding=0")

    dt = jnp.dtype(compute_dtype) if compute_dtype is not None else jnp.dtype(x.dtype)
    itemsize = dt.itemsize
    sublane = {4: 8, 2: 16, 1: 32}[itemsize]
    vmem_limit = 32 * 1024 * 1024

    # ---------------- Path B: large L, keep (N, C, L) layout. ----------------
    # No wrapper transpose/pad HBM passes; batch and time tiles both parallel.
    if l >= min_l_for_time_tiling and c % sublane == 0:
        tl = _round_up(max(target_block_bytes // (c * itemsize), 128), 128)
        if tl >= l:
            tl = l                      # single tile; block dim == array dim OK
        num_tiles = _cdiv(l, tl)
        p_l = num_tiles * tl            # output padded to whole tiles

        xb = x.astype(dt)
        w0 = weight[:, :, 0].astype(dt)
        w1 = weight[:, :, 1].astype(dt)

        # halo[n, :, i] = x[n, :, (i+1)*tl] (zero for the last tile); stored
        # lane-padded (one column per 128-lane slot) so its blocks are aligned.
        idx = jnp.arange(1, num_tiles + 1) * tl
        valid = idx < l
        cols = jnp.take(xb, jnp.minimum(idx, l - 1), axis=2)       # (N, C, T)
        cols = jnp.where(valid[None, None, :], cols, jnp.zeros_like(cols))
        halo = jnp.pad(cols[:, :, :, None],
                       ((0, 0), (0, 0), (0, 0), (0, 127))
                       ).reshape(n, c, num_tiles * 128)

        out = pl.pallas_call(
            _conv1d_k2_kernel,
            out_shape=jax.ShapeDtypeStruct((n, c, p_l), x.dtype),
            grid=(n, num_tiles),
            in_specs=[
                pl.BlockSpec((c, c), lambda b, i: (0, 0)),
                pl.BlockSpec((c, c), lambda b, i: (0, 0)),
                pl.BlockSpec((None, c, tl), lambda b, i: (b, 0, i)),
                pl.BlockSpec((None, c, 128), lambda b, i: (b, 0, i)),
            ],
            out_specs=pl.BlockSpec((None, c, tl), lambda b, i: (b, 0, i)),
            compiler_params=pltpu.CompilerParams(
                dimension_semantics=("parallel", "parallel"),
                vmem_limit_bytes=vmem_limit,
            ),
        )(w0, w1, xb, halo)
        # Any garbage read past L and the zero last-tile halo only reach the
        # discarded t = L-1 / padded output columns, which are sliced off here.
        return out[:, :, : l - 1]

    # ------- Path A: small L (or ragged C) — flatten batch*time on lanes. -----
    cp = _round_up(c, sublane)
    nl = n * l
    tl = _round_up(max(target_block_bytes // (cp * itemsize), 128), 128)
    tl = min(tl, _round_up(nl, 128))
    p = _round_up(nl, tl)
    num_tiles = p // tl

    # (N, C, L) -> (C, N*L); zero-pad channels to Cp and lanes to P.
    x_flat = jnp.transpose(x, (1, 0, 2)).reshape(c, nl)
    x_flat = jnp.pad(x_flat, ((0, cp - c), (0, p - nl))).astype(dt)

    w0 = jnp.pad(weight[:, :, 0], ((0, cp - c), (0, cp - c))).astype(dt)
    w1 = jnp.pad(weight[:, :, 1], ((0, cp - c), (0, cp - c))).astype(dt)

    # Halo column for tile i = first column of tile i+1 (zero for the last).
    if num_tiles > 1:
        cols = jnp.concatenate(
            [x_flat[:, tl::tl], jnp.zeros((cp, 1), dt)], axis=1)   # (cp, T)
    else:
        cols = jnp.zeros((cp, 1), dt)
    halo = jnp.pad(cols[:, :, None],
                   ((0, 0), (0, 0), (0, 127))).reshape(cp, num_tiles * 128)

    out_flat = pl.pallas_call(
        _conv1d_k2_kernel,
        out_shape=jax.ShapeDtypeStruct((cp, p), x.dtype),
        grid=(num_tiles,),
        in_specs=[
            pl.BlockSpec((cp, cp), lambda i: (0, 0)),
            pl.BlockSpec((cp, cp), lambda i: (0, 0)),
            pl.BlockSpec((cp, tl), lambda i: (0, i)),
            pl.BlockSpec((cp, 128), lambda i: (0, i)),
        ],
        out_specs=pl.BlockSpec((cp, tl), lambda i: (0, i)),
        compiler_params=pltpu.CompilerParams(
            dimension_semantics=("parallel",),
            vmem_limit_bytes=vmem_limit,
        ),
    )(w0, w1, x_flat, halo)

    # (Cp, P) -> (C, N*L) -> (N, C, L) -> drop the last (invalid) time step.
    out = out_flat[:c, :nl].reshape(c, n, l).transpose(1, 0, 2)
    return out[:, :, : l - 1]


if __name__ == "__main__":
    key = jax.random.PRNGKey(0)
    kx, kw, kx2, kw2 = jax.random.split(key, 4)

    def _ref(x, w):
        hi = lax.Precision.HIGHEST
        return (jnp.einsum("oc,ncl->nol", w[:, :, 0], x[:, :, :-1], precision=hi) +
                jnp.einsum("oc,ncl->nol", w[:, :, 1], x[:, :, 1:], precision=hi))

    # --- small test: flattened lane path (C not sublane-aligned) ---
    N, C, L = 2, 4, 16
    x = jax.random.normal(kx, (N, C, L), dtype=jnp.float32)
    bound = 1.0 / math.sqrt(C * 2)
    weight = jax.random.uniform(kw, (C, C, 2), jnp.float32, -bound, bound)

    out = jax.block_until_ready(resudial_dilated_block(x, weight))
    assert out.shape == (N, C, L - 1)
    assert jnp.allclose(out, _ref(x, weight), atol=1e-4, rtol=1e-4)

    # --- larger test: direct (N, C, L) time-tiling path (no wrapper transpose) ---
    N2, C2, L2 = 2, 8, 2048
    x2 = jax.random.normal(kx2, (N2, C2, L2), dtype=jnp.float32)
    bound2 = 1.0 / math.sqrt(C2 * 2)
    weight2 = jax.random.uniform(kw2, (C2, C2, 2), jnp.float32, -bound2, bound2)

    out2 = jax.block_until_ready(resudial_dilated_block(x2, weight2))
    assert out2.shape == (N2, C2, L2 - 1)
    assert jnp.allclose(out2, _ref(x2, weight2), atol=1e-4, rtol=1e-4)

    print("KERNEL_OK")
</pallas_src>

<mosaic_0001>
module attributes {stable_mosaic.version = 11 : i64} {
  func.func @_conv1d_k2_kernel(%arg0: i32, %arg1: memref<8x8xf32, #tpu.memory_space<vmem>>, %arg2: memref<8x8xf32, #tpu.memory_space<vmem>>, %arg3: memref<8x128xf32, #tpu.memory_space<vmem>>, %arg4: memref<8x128xf32, #tpu.memory_space<vmem>>, %arg5: memref<8x128xf32, #tpu.memory_space<vmem>>) attributes {dimension_semantics = [#tpu.dimension_semantics<parallel>], iteration_bounds = array<i64: 1>, scalar_prefetch = 0 : i64, scratch_operands = 0 : i64, tpu.core_type = #tpu.core_type<tc>, window_params = [{pipeline_mode = #tpu.pipeline_mode<synchronous>, transform_indices = @transform_0, window_bounds = array<i64: 8, 8>}, {pipeline_mode = #tpu.pipeline_mode<synchronous>, transform_indices = @transform_1, window_bounds = array<i64: 8, 8>}, {transform_indices = @transform_2, window_bounds = array<i64: 8, 128>}, {transform_indices = @transform_3, window_bounds = array<i64: 8, 128>}, {transform_indices = @transform_4, window_bounds = array<i64: 8, 128>}]} {
    %c0 = arith.constant 0 : index
    %c0_0 = arith.constant 0 : index
    %0 = vector.load %arg3[%c0, %c0_0] : memref<8x128xf32, #tpu.memory_space<vmem>>, vector<8x128xf32>
    %c127_i32 = arith.constant 127 : i32
    %1 = tpu.dynamic_rotate %0 by %c127_i32 dim 1 : vector<8x128xf32>, i32 -> vector<8x128xf32>
    %2 = tpu.iota {dimensions = array<i32: 1>} : vector<1x128xi32>
    %c127_i32_1 = arith.constant 127 : i32
    %3 = vector.broadcast %c127_i32_1 : i32 to vector<1x128xi32>
    %4 = arith.cmpi eq, %2, %3 : vector<1x128xi32>
    %c0_2 = arith.constant 0 : index
    %c0_3 = arith.constant 0 : index
    %5 = vector.load %arg4[%c0_2, %c0_3] : memref<8x128xf32, #tpu.memory_space<vmem>>, vector<8x1xf32>
    %6 = vector.shape_cast %4 : vector<1x128xi1> to vector<1x128xi1>
    %7 = vector.broadcast %6 : vector<1x128xi1> to vector<8x128xi1>
    %8 = vector.shape_cast %5 : vector<8x1xf32> to vector<8x1xf32>
    %9 = vector.broadcast %8 : vector<8x1xf32> to vector<8x128xf32>
    %10 = arith.select %7, %9, %1 : vector<8x128xi1>, vector<8x128xf32>
    %c0_4 = arith.constant 0 : index
    %c0_5 = arith.constant 0 : index
    %11 = vector.load %arg1[%c0_4, %c0_5] : memref<8x8xf32, #tpu.memory_space<vmem>>, vector<8x8xf32>
    %cst = arith.constant dense<0.000000e+00> : vector<8x128xf32>
    %12 = tpu.matmul %11, %0, %cst {dimension_numbers = #tpu.dot_dimension_numbers<[1], [0], [0], [1], [0, 0, 1, 1], [], []>} : vector<8x8xf32>, vector<8x128xf32>, vector<8x128xf32> -> vector<8x128xf32>
    %c0_6 = arith.constant 0 : index
    %c0_7 = arith.constant 0 : index
    %13 = vector.load %arg2[%c0_6, %c0_7] : memref<8x8xf32, #tpu.memory_space<vmem>>, vector<8x8xf32>
    %cst_8 = arith.constant dense<0.000000e+00> : vector<8x128xf32>
    %14 = tpu.matmul %13, %10, %cst_8 {dimension_numbers = #tpu.dot_dimension_numbers<[1], [0], [0], [1], [0, 0, 1, 1], [], []>} : vector<8x8xf32>, vector<8x128xf32>, vector<8x128xf32> -> vector<8x128xf32>
    %15 = arith.addf %12, %14 : vector<8x128xf32>
    %c0_9 = arith.constant 0 : index
    %c0_10 = arith.constant 0 : index
    %16 = vector.load %arg5[%c0_9, %c0_10] : memref<8x128xf32, #tpu.memory_space<vmem>>, vector<8x128xf32>
    tpu.vector_store %arg5[%c0_9, %c0_10], %15 {strides = array<i32>} : memref<8x128xf32, #tpu.memory_space<vmem>>, vector<8x128xf32>,
    return
  }
  func.func @transform_0(%arg0: i32) -> (i32, i32) {
    %c0_i32 = arith.constant 0 : i32
    %c0_i32_0 = arith.constant 0 : i32
    %c0_i32_1 = arith.constant 0 : i32
    return %c0_i32, %c0_i32_0 : i32, i32
  }
  func.func @transform_1(%arg0: i32) -> (i32, i32) {
    %c0_i32 = arith.constant 0 : i32
    %c0_i32_0 = arith.constant 0 : i32
    %c0_i32_1 = arith.constant 0 : i32
    return %c0_i32, %c0_i32_0 : i32, i32
  }
  func.func @transform_2(%arg0: i32) -> (i32, i32) {
    %c0_i32 = arith.constant 0 : i32
    %c0_i32_0 = arith.constant 0 : i32
    return %c0_i32, %arg0 : i32, i32
  }
  func.func @transform_3(%arg0: i32) -> (i32, i32) {
    %c0_i32 = arith.constant 0 : i32
    %c0_i32_0 = arith.constant 0 : i32
    return %c0_i32, %arg0 : i32, i32
  }
  func.func @transform_4(%arg0: i32) -> (i32, i32) {
    %c0_i32 = arith.constant 0 : i32
    %c0_i32_0 = arith.constant 0 : i32
    return %c0_i32, %arg0 : i32, i32
  }
}

</mosaic_0001>

<llo_original>
// kernel: tpu_custom_call.1
$region0: #{tpu_custom_call.1}
  #allocation0 [shape = 'u32[]', space=smem, size = 0x4, offset = 0x4, fixed_abs, tag = 'smem constant byte address 0x4 - core index']
  #allocation1 [shape = 'u32[144,128]{1,0:T(1,128)}', space=vmem, size = 0x12000, scoped, tag = 'internal scratch']
  %s0 = inlined_call_operand.hbm [shape: f32[8,8], index: 0, kind: input, shape index: {}]
  %s1 = inlined_call_operand.hbm [shape: f32[8,8], index: 1, kind: input, shape index: {}]
  %s2 = inlined_call_operand.hbm [shape: f32[8,128], index: 2, kind: input, shape index: {}]
  %s3 = inlined_call_operand.hbm [shape: f32[8,128], index: 3, kind: input, shape index: {}]
  %s4 = inlined_call_operand.hbm [shape: f32[8,128], index: 4, kind: output, shape index: {}]
  %s5 = sld [smem:[#allocation0]]
  $region42: #{tpu_custom_call.1} parent=0
    _
  %s7 = ssub.s32 1, %s5
  %s8 = scalar_select 0, %s7, %s5
  $region1: #{tpu_custom_call.1} parent=0
    #allocation2 [shape = 'u8[4096]{0}', space=vmem, size = 0x1000, scoped, tag = 'input window, operand 0, single buffered']
    #allocation3 [shape = 's32[1]{0}', space=sflag, size = 0x4, scoped, tag = 'scoped memory for tpu_custom_call.1']
    #allocation4 [shape = 's32[1]{0}', space=sflag, size = 0x4, scoped, tag = 'scoped memory for tpu_custom_call.1']
    #allocation5 [shape = 'u8[4096]{0}', space=vmem, size = 0x1000, scoped, tag = 'input window, operand 1, single buffered']
    #allocation6 [shape = 's32[1]{0}', space=sflag, size = 0x4, scoped, tag = 'scoped memory for tpu_custom_call.1']
    #allocation7 [shape = 'u8[4096]{0}', space=vmem, size = 0x1000, scoped, tag = 'input window, operand 2, single buffered']
    #allocation8 [shape = 'u8[4096]{0}', space=vmem, size = 0x1000, scoped, tag = 'input window, operand 3, single buffered']
    #allocation9 [shape = 's32[1]{0}', space=sflag, size = 0x4, scoped, tag = 'scoped memory for tpu_custom_call.1']
    #allocation10 [shape = 'u8[4096]{0}', space=vmem, size = 0x1000, scoped, tag = 'output window, operand 0, single buffered']
    %9 = vsyncpa [#allocation3], 0
    %10 = vsyncpa [#allocation6], 0
    %11 = vsyncpa [#allocation9], 0
    %12 = vsyncpa [#allocation4], 0
    // Predicated region
    $region2: #{tpu_custom_call.1} parent=1 // pred_check
      _
    $region3: #{tpu_custom_call.1} parent=1 // pred_check_branch
      %14 = sbr.rel (0) target = $region5
    $region4: #{tpu_custom_call.1} parent=1 // pred_region
      %s16 = ssub.s32 128, 128
      %17 = vsyncadd [#allocation3], %s16
      %s19 = sshll.u32 [#allocation2], 4
      %s20 = int_to_ptr.vmem [resolvable:$true] %s19
      %22 = dma.hbm_to_vmem [thread:$0]  %s0, 128, %s20, [#allocation3]
    $region5: #{tpu_custom_call.1} parent=1 // pred_fallthru
      _
    // Predicated region
    $region6: #{tpu_custom_call.1} parent=1 // pred_check
      _
    $region7: #{tpu_custom_call.1} parent=1 // pred_check_branch
      %24 = sbr.rel (0) target = $region9
    $region8: #{tpu_custom_call.1} parent=1 // pred_region
      %s26 = ssub.s32 128, 128
      %27 = vsyncadd [#allocation6], %s26
      %s29 = sshll.u32 [#allocation5], 4
      %s30 = int_to_ptr.vmem [resolvable:$true] %s29
      %32 = dma.hbm_to_vmem [thread:$0]  %s1, 128, %s30, [#allocation6]
    $region9: #{tpu_custom_call.1} parent=1 // pred_fallthru
      _
    // Predicated region
    $region10: #{tpu_custom_call.1} parent=1 // pred_check
      _
    $region11: #{tpu_custom_call.1} parent=1 // pred_check_branch
      %34 = sbr.rel (0) target = $region13
    $region12: #{tpu_custom_call.1} parent=1 // pred_region
      %s36 = ssub.s32 128, 128
      %37 = vsyncadd [#allocation6], %s36
      %s39 = sshll.u32 [#allocation7], 4
      %s40 = int_to_ptr.vmem [resolvable:$true] %s39
      %42 = dma.hbm_to_vmem [thread:$0]  %s2, 128, %s40, [#allocation6]
    $region13: #{tpu_custom_call.1} parent=1 // pred_fallthru
      _
    // Predicated region
    $region14: #{tpu_custom_call.1} parent=1 // pred_check
      _
    $region15: #{tpu_custom_call.1} parent=1 // pred_check_branch
      %44 = sbr.rel (0) target = $region17
    $region16: #{tpu_custom_call.1} parent=1 // pred_region
      %s46 = ssub.s32 128, 128
      %47 = vsyncadd [#allocation9], %s46
      %s49 = sshll.u32 [#allocation8], 4
      %s50 = int_to_ptr.vmem [resolvable:$true] %s49
      %52 = dma.hbm_to_vmem [thread:$0]  %s3, 128, %s50, [#allocation9]
    $region17: #{tpu_custom_call.1} parent=1 // pred_fallthru
      _
    // Predicated region
    $region18: #{tpu_custom_call.1} parent=1 // pred_check
      _
    $region19: #{tpu_custom_call.1} parent=1 // pred_check_branch
      %54 = sbr.rel (0) target = $region21
    $region20: #{tpu_custom_call.1} parent=1 // pred_region
      %55 = dma.done [#allocation3], 128
    $region21: #{tpu_custom_call.1} parent=1 // pred_fallthru
      _
    // Predicated region
    $region22: #{tpu_custom_call.1} parent=1 // pred_check
      _
    $region23: #{tpu_custom_call.1} parent=1 // pred_check_branch
      %57 = sbr.rel (0) target = $region25
    $region24: #{tpu_custom_call.1} parent=1 // pred_region
      %58 = dma.done [#allocation6], 128
    $region25: #{tpu_custom_call.1} parent=1 // pred_fallthru
      _
    // Predicated region
    $region26: #{tpu_custom_call.1} parent=1 // pred_check
      _
    $region27: #{tpu_custom_call.1} parent=1 // pred_check_branch
      %60 = sbr.rel (0) target = $region29
    $region28: #{tpu_custom_call.1} parent=1 // pred_region
      %61 = dma.done [#allocation6], 128
    $region29: #{tpu_custom_call.1} parent=1 // pred_fallthru
      _
    // Predicated region
    $region30: #{tpu_custom_call.1} parent=1 // pred_check
      _
    $region31: #{tpu_custom_call.1} parent=1 // pred_check_branch
      %63 = sbr.rel (0) target = $region33
    $region32: #{tpu_custom_call.1} parent=1 // pred_region
      %64 = dma.done [#allocation9], 128
    $region33: #{tpu_custom_call.1} parent=1 // pred_fallthru
      _
    %v65 = vld [vmem:[#allocation7] sm:$0xff]
    %66 = vrot.lane.b32.xlu0 %v65, 127
    %v67 = vpop.permute.xlu0 %66
    %v68 = vlaneseq
    %v69 = vand.u32 %v68, 127
    %vm70 = vcmp.eq.s32.totalorder %v69, 127
    %v71 = vld [vmem:[#allocation8] sm:$0xff]
    %v72 = vsel %vm70, 1, 0
    %vm73 = vcmp.eq.s32.totalorder %v72, 1
    %75 = vset.pattern.permute.xlu0 0
    %76 = vperm.xlu0 %75, %v71
    %v77 = vpop.permute.xlu0 %76
    %v79 = vsel %vm73, %v77, %v67
    %v80 = vld [vmem:[#allocation2] sm:$0xff]
    %v81 = vld [vmem:[#allocation5] sm:$0xff]
    %vm82 = vcmask 64512
    %v84 = vsel %vm82, %v81, 0
    %86 = vmatprep.subr.mxu0 0.0
    %87 = vmatpush1.msra.mxu0 0.0
    %88 = vmatprep.subr.mxu0 0.0
    %89 = vmatpush1.msra.mxu0 0.0
    %90 = vmatprep.subr.mxu0 0.0
    %91 = vmatpush1.msra.mxu0 0.0
    %92 = vmatprep.subr.mxu0 0.0
    %93 = vmatpush1.msra.mxu0 0.0
    %94 = vmatprep.subr.mxu0 0.0
    %95 = vmatpush1.msra.mxu0 0.0
    %96 = vmatprep.subr.mxu0 0.0
    %97 = vmatpush1.msra.mxu0 0.0
    %98 = vmatprep.subr.mxu0 0.0
    %99 = vmatpush1.msra.mxu0 0.0
    %100 = vmatprep.subr.mxu0 0.0
    %101 = vmatpush1.msra.mxu0 0.0
    %102 = vmatprep.subr.mxu0 0.0
    %103 = vmatpush1.msra.mxu0 0.0
    %104 = vmatprep.subr.mxu0 0.0
    %105 = vmatpush1.msra.mxu0 0.0
    %106 = vmatprep.subr.mxu0 0.0
    %107 = vmatpush1.msra.mxu0 0.0
    %108 = vmatprep.subr.mxu0 0.0
    %109 = vmatpush1.msra.mxu0 0.0
    %110 = vmatprep.subr.mxu0 0.0
    %111 = vmatpush1.msra.mxu0 0.0
    %112 = vmatprep.subr.mxu0 0.0
    %113 = vmatpush1.msra.mxu0 0.0
    %114 = vmatprep.subr.mxu0 0.0
    %115 = vmatpush1.msra.mxu0 0.0
    %116 = vmatprep.subr.mxu0 0.0
    %117 = vmatpush1.msra.mxu0 %v79
    %118 = vmatprep.subr.mxu0 0.0
    %119 = vmatpush2.msra.mxu0 0.0
    %120 = vmatprep.subr.mxu0 0.0
    %121 = vmatpush2.msra.mxu0 0.0
    %122 = vmatprep.subr.mxu0 0.0
    %123 = vmatpush2.msra.mxu0 0.0
    %124 = vmatprep.subr.mxu0 0.0
    %125 = vmatpush2.msra.mxu0 0.0
    %126 = vmatprep.subr.mxu0 0.0
    %127 = vmatpush2.msra.mxu0 0.0
    %128 = vmatprep.subr.mxu0 0.0
    %129 = vmatpush2.msra.mxu0 0.0
    %130 = vmatprep.subr.mxu0 0.0
    %131 = vmatpush2.msra.mxu0 0.0
    %132 = vmatprep.subr.mxu0 0.0
    %133 = vmatpush2.msra.mxu0 0.0
    %134 = vmatprep.subr.mxu0 0.0
    %135 = vmatpush2.msra.mxu0 0.0
    %136 = vmatprep.subr.mxu0 0.0
    %137 = vmatpush2.msra.mxu0 0.0
    %138 = vmatprep.subr.mxu0 0.0
    %139 = vmatpush2.msra.mxu0 0.0
    %140 = vmatprep.subr.mxu0 0.0
    %141 = vmatpush2.msra.mxu0 0.0
    %142 = vmatprep.subr.mxu0 0.0
    %143 = vmatpush2.msra.mxu0 0.0
    %144 = vmatprep.subr.mxu0 0.0
    %145 = vmatpush2.msra.mxu0 0.0
    %146 = vmatprep.subr.mxu0 0.0
    %147 = vmatpush2.msra.mxu0 0.0
    %148 = vmatprep.subr.mxu0 0.0
    %149 = vmatpush2.msra.mxu0 0.0
    %150 = vmatprep.mubr.f32.mxu0 0.0
    %151 = vmatmul.mubr.f32.gmra.mxu0 %v84
    %v152 = vpop.f32.mrf.mxu0
    %v153 = vadd.f32 0.0, %v152
    %v154 = vpop.f32.mrf.mxu0
    %155 = vdwg.mxu0
    %v157 = vsel %vm82, %v80, 0
    %159 = vmatprep.subr.mxu0 0.0
    %160 = vmatpush1.msra.mxu0 0.0
    %161 = vmatprep.subr.mxu0 0.0
    %162 = vmatpush1.msra.mxu0 0.0
    %163 = vmatprep.subr.mxu0 0.0
    %164 = vmatpush1.msra.mxu0 0.0
    %165 = vmatprep.subr.mxu0 0.0
    %166 = vmatpush1.msra.mxu0 0.0
    %167 = vmatprep.subr.mxu0 0.0
    %168 = vmatpush1.msra.mxu0 0.0
    %169 = vmatprep.subr.mxu0 0.0
    %170 = vmatpush1.msra.mxu0 0.0
    %171 = vmatprep.subr.mxu0 0.0
    %172 = vmatpush1.msra.mxu0 0.0
    %173 = vmatprep.subr.mxu0 0.0
    %174 = vmatpush1.msra.mxu0 0.0
    %175 = vmatprep.subr.mxu0 0.0
    %176 = vmatpush1.msra.mxu0 0.0
    %177 = vmatprep.subr.mxu0 0.0
    %178 = vmatpush1.msra.mxu0 0.0
    %179 = vmatprep.subr.mxu0 0.0
    %180 = vmatpush1.msra.mxu0 0.0
    %181 = vmatprep.subr.mxu0 0.0
    %182 = vmatpush1.msra.mxu0 0.0
    %183 = vmatprep.subr.mxu0 0.0
    %184 = vmatpush1.msra.mxu0 0.0
    %185 = vmatprep.subr.mxu0 0.0
    %186 = vmatpush1.msra.mxu0 0.0
    %187 = vmatprep.subr.mxu0 0.0
    %188 = vmatpush1.msra.mxu0 0.0
    %189 = vmatprep.subr.mxu0 0.0
    %190 = vmatpush1.msra.mxu0 %v65
    %191 = vmatprep.subr.mxu0 0.0
    %192 = vmatpush2.msra.mxu0 0.0
    %193 = vmatprep.subr.mxu0 0.0
    %194 = vmatpush2.msra.mxu0 0.0
    %195 = vmatprep.subr.mxu0 0.0
    %196 = vmatpush2.msra.mxu0 0.0
    %197 = vmatprep.subr.mxu0 0.0
    %198 = vmatpush2.msra.mxu0 0.0
    %199 = vmatprep.subr.mxu0 0.0
    %200 = vmatpush2.msra.mxu0 0.0
    %201 = vmatprep.subr.mxu0 0.0
    %202 = vmatpush2.msra.mxu0 0.0
    %203 = vmatprep.subr.mxu0 0.0
    %204 = vmatpush2.msra.mxu0 0.0
    %205 = vmatprep.subr.mxu0 0.0
    %206 = vmatpush2.msra.mxu0 0.0
    %207 = vmatprep.subr.mxu0 0.0
    %208 = vmatpush2.msra.mxu0 0.0
    %209 = vmatprep.subr.mxu0 0.0
    %210 = vmatpush2.msra.mxu0 0.0
    %211 = vmatprep.subr.mxu0 0.0
    %212 = vmatpush2.msra.mxu0 0.0
    %213 = vmatprep.subr.mxu0 0.0
    %214 = vmatpush2.msra.mxu0 0.0
    %215 = vmatprep.subr.mxu0 0.0
    %216 = vmatpush2.msra.mxu0 0.0
    %217 = vmatprep.subr.mxu0 0.0
    %218 = vmatpush2.msra.mxu0 0.0
    %219 = vmatprep.subr.mxu0 0.0
    %220 = vmatpush2.msra.mxu0 0.0
    %221 = vmatprep.subr.mxu0 0.0
    %222 = vmatpush2.msra.mxu0 0.0
    %223 = vmatprep.mubr.f32.mxu0 0.0
    %224 = vmatmul.mubr.f32.gmra.mxu0 %v157
    %v225 = vpop.f32.mrf.mxu0
    %v226 = vadd.f32 %v153, %v225
    %v227 = vpop.f32.mrf.mxu0
    %228 = vdwg.mxu0
    %229 = vst [vmem:[#allocation10] sm:$0xff] %v226
    // Predicated region
    $region34: #{tpu_custom_call.1} parent=1 // pred_check
      _
    $region35: #{tpu_custom_call.1} parent=1 // pred_check_branch
      %231 = sbr.rel (0) target = $region37
    $region36: #{tpu_custom_call.1} parent=1 // pred_region
      %s233 = ssub.s32 128, 128
      %234 = vsyncadd [#allocation4], %s233
      %s236 = sshll.u32 [#allocation10], 4
      %s237 = int_to_ptr.vmem [resolvable:$true] %s236
      %239 = dma.vmem_to_hbm [thread:$0]  %s237, 128, %s4, [#allocation4]
    $region37: #{tpu_custom_call.1} parent=1 // pred_fallthru
      _
    // Predicated region
    $region38: #{tpu_custom_call.1} parent=1 // pred_check
      _
    $region39: #{tpu_custom_call.1} parent=1 // pred_check_branch
      %241 = sbr.rel (0) target = $region41
    $region40: #{tpu_custom_call.1} parent=1 // pred_region
      %242 = dma.done [#allocation4], 128
    $region41: #{tpu_custom_call.1} parent=1 // pred_fallthru
      _
    %243 = vsyncpa [#allocation3], 1
    %244 = vsyncpa [#allocation6], 1
    %245 = vsyncpa [#allocation9], 1
    %246 = vsyncpa [#allocation4], 1

</llo_original>
